<compile_context>
chip_gen: v5e
topology: v5e:2x2
jax: 0.10.0
libtpu: 0.0.40
codegen_flags: <defaults>
</compile_context>

<pallas_src>
import jax
import jax.numpy as jnp
from jax.experimental import pallas as pl
from jax.experimental.pallas import tpu as pltpu


def _copy_kernel(x_ref, o_ref):
    # Identity copy of the current VMEM tile; the reshape itself is metadata.
    o_ref[...] = x_ref[...]


def _identity_copy_flat(flat, total):
    """Materialize a flat 1-D buffer of `total` elements via a Pallas copy."""
    itemsize = jnp.dtype(flat.dtype).itemsize
    cost = pl.CostEstimate(
        flops=0, transcendentals=0, bytes_accessed=2 * total * itemsize
    )

    # Widest lane-dense width (multiple of 128, up to 4096) that divides total.
    width = 0
    for cand in range(4096, 0, -128):
        if total % cand == 0:
            width = cand
            break

    if width == 0:
        # total is not a multiple of 128: copy as one full-array block
        # (block_shape == full dims sidesteps the (8,128) constraint).  The
        # buffers this module sees are small; a huge unaligned buffer would
        # instead want a masked-tail tiled path.
        x2d = flat.reshape(1, total)
        out2d = pl.pallas_call(
            _copy_kernel,
            out_shape=jax.ShapeDtypeStruct((1, total), flat.dtype),
            input_output_aliases={0: 0},
            cost_estimate=cost,
        )(x2d)
        return out2d.reshape(-1)

    rows = total // width

    # Dtype-aware sublane multiple (8 for f32, 16 for bf16, 32 for int8).
    sub = max(8, 32 // itemsize)
    # ~2 MiB tiles: in+out, double-buffered (~8 MiB) fits every generation's
    # scoped-VMEM default while reaching ~85%+ of the HBM roofline.
    target_block_bytes = 2 * 1024 * 1024
    if rows <= sub:
        tile_rows = rows                       # block == full dim: always legal
    else:
        tile_rows = min(rows, max(1, target_block_bytes // (width * itemsize)))
        tile_rows = max(sub, (tile_rows // sub) * sub)

    grid = (pl.cdiv(rows, tile_rows),)         # edge tile (if any) is masked

    x2d = flat.reshape(rows, width)            # metadata-only reshape
    out2d = pl.pallas_call(
        _copy_kernel,
        out_shape=jax.ShapeDtypeStruct((rows, width), flat.dtype),
        grid_spec=pltpu.PrefetchScalarGridSpec(
            num_scalar_prefetch=0,
            grid=grid,
            in_specs=[pl.BlockSpec((tile_rows, width), lambda i: (i, 0))],
            out_specs=pl.BlockSpec((tile_rows, width), lambda i: (i, 0)),
        ),
        compiler_params=pltpu.CompilerParams(
            dimension_semantics=("parallel",),
        ),
        input_output_aliases={0: 0},
        cost_estimate=cost,
    )(x2d)
    return out2d.reshape(-1)


def conv_view(x, input_w, input_h, input_d):
    """Equivalent of Conv(input_w, input_h, input_d).forward(x)."""
    total = x.size
    assert total == input_w * input_h * input_d, (
        f"cannot view {x.shape} as ({input_w}, {input_h}, {input_d})"
    )
    # Row-major flatten + final reshape are pure metadata (same element order
    # as torch.Tensor.view on a contiguous tensor); the kernel only does the
    # single unavoidable materialization pass.
    flat = x.reshape(-1)
    out_flat = _identity_copy_flat(flat, total)
    return out_flat.reshape(input_w, input_h, input_d)


if __name__ == "__main__":
    key = jax.random.PRNGKey(0)
    # Small NCHW input: (2, 4, 16, 16) -> 2048 elements.
    x = jax.random.normal(key, (2, 4, 16, 16), dtype=jnp.float32)

    input_w, input_h, input_d = 8, 16, 16  # 8*16*16 == 2048

    run = jax.jit(conv_view, static_argnums=(1, 2, 3))
    out = run(x, input_w, input_h, input_d)
    out = jax.block_until_ready(out)

    # Reference: row-major reshape (identical semantics to torch .view on a
    # contiguous tensor).
    ref = x.reshape(input_w, input_h, input_d)
    assert out.shape == (input_w, input_h, input_d)
    assert out.dtype == x.dtype
    assert bool(jnp.array_equal(out, ref))

    print("KERNEL_OK")
</pallas_src>

<mosaic_0001>
module attributes {stable_mosaic.version = 11 : i64} {
  func.func @_copy_kernel(%arg0: i32, %arg1: memref<1x2048xf32, #tpu.memory_space<vmem>>, %arg2: memref<1x2048xf32, #tpu.memory_space<vmem>>) attributes {dimension_semantics = [#tpu.dimension_semantics<parallel>], iteration_bounds = array<i64: 1>, scalar_prefetch = 0 : i64, scratch_operands = 0 : i64, tpu.core_type = #tpu.core_type<tc>, window_params = [{transform_indices = @transform_0, window_bounds = array<i64: 1, 2048>}, {transform_indices = @transform_1, window_bounds = array<i64: 1, 2048>}]} {
    %c0 = arith.constant 0 : index
    %c0_0 = arith.constant 0 : index
    %0 = vector.load %arg1[%c0, %c0_0] : memref<1x2048xf32, #tpu.memory_space<vmem>>, vector<1x2048xf32>
    %c0_1 = arith.constant 0 : index
    %c0_2 = arith.constant 0 : index
    %1 = vector.load %arg2[%c0_1, %c0_2] : memref<1x2048xf32, #tpu.memory_space<vmem>>, vector<1x2048xf32>
    tpu.vector_store %arg2[%c0_1, %c0_2], %0 {strides = array<i32>} : memref<1x2048xf32, #tpu.memory_space<vmem>>, vector<1x2048xf32>,
    return
  }
  func.func @transform_0(%arg0: i32) -> (i32, i32) {
    %c0_i32 = arith.constant 0 : i32
    %c0_i32_0 = arith.constant 0 : i32
    return %arg0, %c0_i32 : i32, i32
  }
  func.func @transform_1(%arg0: i32) -> (i32, i32) {
    %c0_i32 = arith.constant 0 : i32
    %c0_i32_0 = arith.constant 0 : i32
    return %arg0, %c0_i32 : i32, i32
  }
}

</mosaic_0001>

<llo_original>
// kernel: conv_view.1
$region0: #{conv_view.1}
  #allocation0 [shape = 'u32[]', space=smem, size = 0x4, offset = 0x4, fixed_abs, tag = 'smem constant byte address 0x4 - core index']
  #allocation1 [shape = 'u32[72,128]{1,0:T(1,128)}', space=vmem, size = 0x9000, scoped, tag = 'internal scratch']
  %s0 = inlined_call_operand.vmem [shape: f32[1,2048], index: 0, kind: input, shape index: {}, may-alias: {0,1}]
  %s1 = inlined_call_operand.vmem [shape: f32[1,2048], index: 1, kind: output, shape index: {}, may-alias: {0,1}]
  %s2 = sld [smem:[#allocation0]]
  $region14: #{conv_view.1} parent=0
    _
  %s4 = ssub.s32 1, %s2
  %s5 = scalar_select 0, %s4, %s2
  // Predicated region
  $region2: #{conv_view.1} parent=0 // pred_check
    _
  $region3: #{conv_view.1} parent=0 // pred_check_branch
    %7 = sbr.rel (0) target = $region5
  $region4: #{conv_view.1} parent=0 // pred_region
    _
  $region5: #{conv_view.1} parent=0 // pred_fallthru
    _
  %v8 = vld [vmem:[%s0] sm:$0xff]
  %v9 = vld [vmem:[%s0 + $0x8] sm:$0xff]
  %10 = vst [vmem:[%s1] sm:$0xff] %v8
  %11 = vst [vmem:[%s1 + $0x8] sm:$0xff] %v9
  // Predicated region
  $region6: #{conv_view.1} parent=0 // pred_check
    _
  $region7: #{conv_view.1} parent=0 // pred_check_branch
    %13 = sbr.rel (0) target = $region9
  $region8: #{conv_view.1} parent=0 // pred_region
    _
  $region9: #{conv_view.1} parent=0 // pred_fallthru
    _
  // Predicated region
  $region10: #{conv_view.1} parent=0 // pred_check
    _
  $region11: #{conv_view.1} parent=0 // pred_check_branch
    %15 = sbr.rel (0) target = $region13
  $region12: #{conv_view.1} parent=0 // pred_region
    _
  $region13: #{conv_view.1} parent=0 // pred_fallthru
    _

</llo_original>
